<compile_context>
chip_gen: v6e
topology: v6e:2x2x1
jax: 0.10.0
libtpu: 0.0.40
codegen_flags: <defaults>
</compile_context>

<pallas_src>
import functools

import numpy as np

import jax
import jax.numpy as jnp
from jax.experimental import pallas as pl
from jax.experimental.pallas import tpu as pltpu

NEG_INF = -1e30


def _round_up(x, m):
    return ((x + m - 1) // m) * m


def _graphprop_kernel(*refs, flag_distance, maxp, max_deg, base):
    """One grid step = (one feature-column tile, one topological level)."""
    if flag_distance:
        feat_hbm, intra_ref, gmat_ref, delay_ref, out_ref, copy_sem = refs
    else:
        feat_hbm, gmat_ref, out_ref, copy_sem = refs
        intra_ref = delay_ref = None

    f = pl.program_id(0)     # feature-column tile ("parallel")
    lvl = pl.program_id(1)   # topological level ("arbitrary", sequential)

    # Initialize the resident feature buffer for this column tile once, with a
    # single DMA straight from HBM (no second resident [Np, tf] VMEM block).
    @pl.when(lvl == 0)
    def _init():
        cp = pltpu.make_async_copy(feat_hbm.at[f], out_ref, copy_sem)
        cp.start()
        cp.wait()

    src = out_ref[...]                       # [Np, tf] current features (f32)
    if flag_distance:
        src = src + intra_ref[...]

    # MXU one-hot gather: row (d*maxp + p) selects the d-th predecessor of
    # this level's p-th destination (or the -inf sentinel row if absent).
    gathered = jnp.dot(gmat_ref[...].astype(jnp.float32), src,
                       preferred_element_type=jnp.float32)   # [max_deg*maxp, tf]

    # Max over predecessor slots: (max_deg - 1) full-tile VPU maxima.
    acc = gathered[0:maxp, :]
    for d in range(1, max_deg):
        acc = jnp.maximum(acc, gathered[d * maxp:(d + 1) * maxp, :])

    if flag_distance:
        acc = acc + delay_ref[...]

    # This level's destinations are contiguous, 8-aligned rows -> one store.
    start = pl.multiple_of(base + lvl * maxp, maxp)
    out_ref[pl.ds(start, maxp), :] = acc.astype(out_ref.dtype)


def graph_prop(adj, topo, feat, intra_delay, delay, flag_distance):
    """GraphProp forward.

    adj:   [N, N] dense adjacency, adj[i, j] == 1.0  <=>  edge j -> i
    topo:  list of per-level node-index lists (topo[0] = sources, not updated)
    feat / intra_delay / delay: [N, F]
    """
    N, F = feat.shape
    adj_np = np.asarray(adj)
    has_pred = (adj_np > 0.0).sum(axis=1) > 0

    # ---- host-side graph preprocessing (static structure) -------------------
    levels = []
    updated = set()
    for nodes in topo[1:]:
        keep = [int(n) for n in nodes if has_pred[int(n)]]
        if keep:
            levels.append(keep)
            updated.update(keep)
    if not levels:
        return feat

    never = [i for i in range(N) if i not in updated]     # never-updated nodes
    num_levels = len(levels)
    maxp = _round_up(max(len(lv) for lv in levels), 8)     # destinations/level
    max_deg = max(int((adj_np[n] > 0.0).sum()) for lv in levels for n in lv)
    R = max_deg * maxp

    sentinel = len(never)                      # row pinned to -1e30
    base = _round_up(sentinel + 1, maxp)       # start of level-0 destinations
    Np = base + num_levels * maxp              # padded node count (mult. of 8)

    # Renumbering: never-updated nodes first, then one maxp-row block / level.
    new_of = np.zeros(N, dtype=np.int32)
    gather_idx = np.zeros(Np, dtype=np.int32)  # pad rows gather row 0 (unused)
    for k, old in enumerate(never):
        new_of[old] = k
        gather_idx[k] = old
    for li, lv in enumerate(levels):
        for p, old in enumerate(lv):
            ni = base + li * maxp + p
            new_of[old] = ni
            gather_idx[ni] = old

    # Per-level one-hot gather matrices [L, max_deg*maxp, Np].  Kept bf16
    # (0/1 are exact; half the HBM/VMEM of f32), upcast in-kernel before dot.
    gmat = np.zeros((num_levels, R, Np), dtype=np.float32)
    gmat[:, :, sentinel] = 1.0                 # default: point at -inf sentinel
    for li, lv in enumerate(levels):
        for p, old in enumerate(lv):
            preds = np.nonzero(adj_np[old] > 0.0)[0]
            for d, pj in enumerate(preds):
                row = d * maxp + p
                gmat[li, row, sentinel] = 0.0
                gmat[li, row, new_of[int(pj)]] = 1.0
    gmat_dev = jnp.asarray(gmat).astype(jnp.bfloat16)

    # ---- feature layout: pad F to a lane multiple, split into column tiles --
    F_pad = _round_up(F, 128)
    n_ftiles = 2 if (F_pad >= 256 and F_pad % 256 == 0) else 1   # v7x dual-TC
    tf = F_pad // n_ftiles

    gidx = jnp.asarray(gather_idx)

    def _prep(x):
        x = jnp.asarray(x, dtype=jnp.float32)
        if F_pad != F:
            x = jnp.pad(x, ((0, 0), (0, F_pad - F)))
        return jnp.take(x, gidx, axis=0)                    # [Np, F_pad]

    feat_p = _prep(feat).at[sentinel, :].set(NEG_INF)
    # HBM source for the level-0 init, pre-split into column tiles so the
    # in-kernel DMA is a simple leading-axis index.
    feat_tiles = feat_p.reshape(Np, n_ftiles, tf).transpose(1, 0, 2)  # [nf,Np,tf]

    inputs = [feat_tiles]
    in_specs = [pl.BlockSpec(memory_space=pl.ANY)]          # raw HBM, DMA once
    if flag_distance:
        intra_p = _prep(intra_delay).at[sentinel, :].set(0.0)
        inputs.append(intra_p)
        in_specs.append(pl.BlockSpec((Np, tf), lambda f, l: (0, f)))  # resident
    inputs.append(gmat_dev)
    in_specs.append(pl.BlockSpec((None, R, Np), lambda f, l: (l, 0, 0)))
    if flag_distance:
        delay_p = _prep(delay)
        inputs.append(delay_p)
        in_specs.append(
            pl.BlockSpec((maxp, tf), lambda f, l: (base // maxp + l, f)))

    out_spec = pl.BlockSpec((Np, tf), lambda f, l: (0, f))  # resident accumulator

    # Explicit VMEM budget: resident blocks + double-buffered per-level blocks.
    resident = Np * tf * 4 * (2 if flag_distance else 1)
    streamed = 2 * R * Np * 2 + (2 * maxp * tf * 4 if flag_distance else 0)
    temps = (R + Np + maxp) * tf * 4
    vmem_limit = min(max(int(1.5 * (resident + streamed + temps)) + (2 << 20),
                         32 << 20), 64 << 20)

    kernel = functools.partial(
        _graphprop_kernel,
        flag_distance=flag_distance, maxp=maxp, max_deg=max_deg, base=base)

    grid_spec = pltpu.PrefetchScalarGridSpec(
        num_scalar_prefetch=0,
        grid=(n_ftiles, num_levels),
        in_specs=in_specs,
        out_specs=out_spec,
        scratch_shapes=[pltpu.SemaphoreType.DMA(())],
    )

    out_p = pl.pallas_call(
        kernel,
        grid_spec=grid_spec,
        out_shape=jax.ShapeDtypeStruct((Np, F_pad), jnp.float32),
        compiler_params=pltpu.CompilerParams(
            dimension_semantics=("parallel", "arbitrary"),
            vmem_limit_bytes=vmem_limit,
        ),
    )(*inputs)

    # Un-permute, drop padding rows/cols, restore the original dtype.
    result = jnp.take(out_p, jnp.asarray(new_of), axis=0)[:, :F]
    return result.astype(feat.dtype)


def graph_prop_ref(adj, topo, feat, intra_delay, delay, flag_distance):
    """Plain-JAX reference of the same semantics."""
    N = feat.shape[0]
    has_pred = jnp.sum(adj > 0.0, axis=1) > 0
    f = feat
    for nodes in topo[1:]:
        src = f + intra_delay if flag_distance else f
        masked = jnp.where(adj[:, :, None] > 0.0, src[None, :, :], NEG_INF)
        m = jnp.max(masked, axis=1)
        new = m + delay if flag_distance else m
        upd = jnp.zeros((N,), dtype=bool).at[jnp.asarray(nodes)].set(True) & has_pred
        f = jnp.where(upd[:, None], new, f)
    return f


if __name__ == "__main__":
    N = 16

    # Deterministic 4-level DAG: levels [0..3], [4..7], [8..11], [12..15];
    # each node in level k+1 has exactly 2 predecessors in level k.
    topo = [list(range(0, 4)), list(range(4, 8)),
            list(range(8, 12)), list(range(12, 16))]
    adj_py = [[0.0] * N for _ in range(N)]
    for li in range(1, len(topo)):
        prev = topo[li - 1]
        for idx, node in enumerate(topo[li]):
            adj_py[node][prev[idx % 4]] = 1.0
            adj_py[node][prev[(idx + 1) % 4]] = 1.0
    adj = jnp.array(adj_py, dtype=jnp.float32)                # [N, N]

    key = jax.random.PRNGKey(0)
    ok = True
    for F in (128, 192):   # lane-aligned path and padded / two-column-tile path
        k1, k2, k3 = jax.random.split(jax.random.fold_in(key, F), 3)
        feat = jax.random.normal(k1, (N, F), dtype=jnp.float32)
        intra_delay = jax.random.normal(k2, (N, F), dtype=jnp.float32)
        delay = jax.random.normal(k3, (N, F), dtype=jnp.float32)
        for flag_distance in (True, False):
            out = jax.block_until_ready(
                graph_prop(adj, topo, feat, intra_delay, delay, flag_distance))
            ref = graph_prop_ref(adj, topo, feat, intra_delay, delay, flag_distance)
            ok = ok and bool(jnp.allclose(out, ref, atol=1e-5, rtol=1e-5))

    print("KERNEL_OK" if ok else "KERNEL_MISMATCH")
</pallas_src>

<mosaic_0001>
module attributes {stable_mosaic.version = 11 : i64} {
  func.func @_graphprop_kernel(%arg0: i32, %arg1: i32, %arg2: memref<1x32x128xf32, #tpu.memory_space<any>>, %arg3: memref<32x128xf32, #tpu.memory_space<vmem>>, %arg4: memref<1x16x32xbf16, #tpu.memory_space<vmem>>, %arg5: memref<8x128xf32, #tpu.memory_space<vmem>>, %arg6: memref<32x128xf32, #tpu.memory_space<vmem>>, %arg7: memref<!tpu.dma_semaphore, #tpu.memory_space<semaphore_mem>>) attributes {dimension_semantics = [#tpu.dimension_semantics<parallel>, #tpu.dimension_semantics<arbitrary>], iteration_bounds = array<i64: 1, 3>, scalar_prefetch = 0 : i64, scratch_operands = 1 : i64, tpu.core_type = #tpu.core_type<tc>, window_params = [{}, {transform_indices = @transform_1, window_bounds = array<i64: 32, 128>}, {transform_indices = @transform_2, window_bounds = array<i64: 1, 16, 32>}, {transform_indices = @transform_3, window_bounds = array<i64: 8, 128>}, {transform_indices = @transform_4, window_bounds = array<i64: 32, 128>}]} {
    %c0_i32 = arith.constant 0 : i32
    %0 = arith.cmpi eq, %arg1, %c0_i32 : i32
    %1 = arith.extui %0 : i1 to i32
    %c0_i32_0 = arith.constant 0 : i32
    %2 = arith.cmpi ne, %1, %c0_i32_0 : i32
    scf.if %2 {
      %c0_i32_11 = arith.constant 0 : i32
      %c0_i32_12 = arith.constant 0 : i32
      %20 = tpu.memref_slice %arg2[%arg0, %c0_i32_11, %c0_i32_12] : memref<1x32x128xf32, #tpu.memory_space<any>> -> memref<1x32x128xf32, #tpu.memory_space<any>>
      %21 = tpu.memref_squeeze %20 : memref<1x32x128xf32, #tpu.memory_space<any>> -> memref<32x128xf32, #tpu.memory_space<any>>
      tpu.enqueue_dma source(%21 : memref<32x128xf32, #tpu.memory_space<any>>) target(%arg6 : memref<32x128xf32, #tpu.memory_space<vmem>>) target_semaphore(%arg7 : memref<!tpu.dma_semaphore, #tpu.memory_space<semaphore_mem>>)
      %c0_i32_13 = arith.constant 0 : i32
      %c0_i32_14 = arith.constant 0 : i32
      %22 = tpu.memref_slice %arg2[%arg0, %c0_i32_13, %c0_i32_14] : memref<1x32x128xf32, #tpu.memory_space<any>> -> memref<1x32x128xf32, #tpu.memory_space<any>>
      %23 = tpu.memref_squeeze %22 : memref<1x32x128xf32, #tpu.memory_space<any>> -> memref<32x128xf32, #tpu.memory_space<any>>
      tpu.wait_dma2 semaphore(%arg7 : memref<!tpu.dma_semaphore, #tpu.memory_space<semaphore_mem>>) src(%23 : memref<32x128xf32, #tpu.memory_space<any>>) dst(%arg6 : memref<32x128xf32, #tpu.memory_space<vmem>>)
    } else {
    }
    %c0 = arith.constant 0 : index
    %c0_1 = arith.constant 0 : index
    %3 = vector.load %arg6[%c0, %c0_1] : memref<32x128xf32, #tpu.memory_space<vmem>>, vector<32x128xf32>
    %c0_2 = arith.constant 0 : index
    %c0_3 = arith.constant 0 : index
    %4 = vector.load %arg3[%c0_2, %c0_3] : memref<32x128xf32, #tpu.memory_space<vmem>>, vector<32x128xf32>
    %5 = arith.addf %3, %4 : vector<32x128xf32>
    %c0_4 = arith.constant 0 : index
    %c0_5 = arith.constant 0 : index
    %c0_6 = arith.constant 0 : index
    %6 = vector.load %arg4[%c0_4, %c0_5, %c0_6] : memref<1x16x32xbf16, #tpu.memory_space<vmem>>, vector<1x16x32xbf16>
    %7 = vector.shape_cast %6 : vector<1x16x32xbf16> to vector<16x32xbf16>
    %8 = arith.extf %7 : vector<16x32xbf16> to vector<16x32xf32>
    %cst = arith.constant dense<0.000000e+00> : vector<16x128xf32>
    %9 = tpu.matmul %8, %5, %cst {dimension_numbers = #tpu.dot_dimension_numbers<[1], [0], [0], [1], [0, 0, 1, 1], [], []>} : vector<16x32xf32>, vector<32x128xf32>, vector<16x128xf32> -> vector<16x128xf32>
    %10 = vector.extract_strided_slice %9 {offsets = [0, 0], sizes = [8, 128], strides = [1, 1]} : vector<16x128xf32> to vector<8x128xf32>
    %11 = vector.extract_strided_slice %9 {offsets = [8, 0], sizes = [8, 128], strides = [1, 1]} : vector<16x128xf32> to vector<8x128xf32>
    %12 = arith.maximumf %10, %11 : vector<8x128xf32>
    %c0_7 = arith.constant 0 : index
    %c0_8 = arith.constant 0 : index
    %13 = vector.load %arg5[%c0_7, %c0_8] : memref<8x128xf32, #tpu.memory_space<vmem>>, vector<8x128xf32>
    %14 = arith.addf %12, %13 : vector<8x128xf32>
    %c8_i32 = arith.constant 8 : i32
    %15 = arith.muli %arg1, %c8_i32 : i32
    %c8_i32_9 = arith.constant 8 : i32
    %16 = arith.addi %c8_i32_9, %15 : i32
    %17 = tpu.assume_multiple %16, 8 : i32
    %18 = arith.index_cast %17 : i32 to index
    %c0_10 = arith.constant 0 : index
    %19 = vector.load %arg6[%18, %c0_10] : memref<32x128xf32, #tpu.memory_space<vmem>>, vector<8x128xf32>
    tpu.vector_store %arg6[%18, %c0_10], %14 {strides = array<i32>} : memref<32x128xf32, #tpu.memory_space<vmem>>, vector<8x128xf32>,
    return
  }
  func.func @transform_1(%arg0: i32, %arg1: i32) -> (i32, i32) {
    %c0_i32 = arith.constant 0 : i32
    %c0_i32_0 = arith.constant 0 : i32
    return %c0_i32, %arg0 : i32, i32
  }
  func.func @transform_2(%arg0: i32, %arg1: i32) -> (i32, i32, i32) {
    %c0_i32 = arith.constant 0 : i32
    %c0_i32_0 = arith.constant 0 : i32
    %c0_i32_1 = arith.constant 0 : i32
    return %arg1, %c0_i32, %c0_i32_0 : i32, i32, i32
  }
  func.func @transform_3(%arg0: i32, %arg1: i32) -> (i32, i32) {
    %c1_i32 = arith.constant 1 : i32
    %0 = arith.addi %c1_i32, %arg1 : i32
    %c0_i32 = arith.constant 0 : i32
    return %0, %arg0 : i32, i32
  }
  func.func @transform_4(%arg0: i32, %arg1: i32) -> (i32, i32) {
    %c0_i32 = arith.constant 0 : i32
    %c0_i32_0 = arith.constant 0 : i32
    return %c0_i32, %arg0 : i32, i32
  }
}

</mosaic_0001>

<llo_original>
// kernel: tpu_custom_call.1
$region0: #{tpu_custom_call.1}
  #allocation0 [shape = 'u32[]', space=smem, size = 0x4, offset = 0x4, fixed_abs, tag = 'smem constant byte address 0x4 - core index']
  #allocation1 [shape = 'u32[144,128]{1,0:T(1,128)}', space=vmem, size = 0x12000, scoped, tag = 'internal scratch']
  #allocation2 [shape = 's32[1]{0}', space=sflag, size = 0x4, scoped, tag = 'scratch operand']
  #allocation10 [shape = 's32[]', space=sflag, size = 0x4, offset = 0, fixed_abs, tag = 'sflag constant byte address 0x0 - dummy sync flag']
  #allocation11 [shape = 's32[]', space=sflag, size = 0x4, offset = 0, fixed_abs, tag = 'sflag constant byte address 0x0 - dummy sync flag']
  #allocation12 [shape = 'u32[]', space=smem, size = 0x4, offset = 0x44, fixed_abs, tag = 'smem constant byte address 0x44 - assertion arg 0']
  #allocation13 [shape = 'u32[]', space=smem, size = 0x4, offset = 0x48, fixed_abs, tag = 'smem constant byte address 0x48 - assertion arg 1']
  %s0 = inlined_call_operand.hbm [shape: f32[1,32,128], index: 0, kind: input, shape index: {}]
  %s1 = inlined_call_operand.hbm [shape: f32[32,128], index: 1, kind: input, shape index: {}]
  %s2 = inlined_call_operand.hbm [shape: bf16[3,16,32], index: 2, kind: input, shape index: {}]
  %s3 = inlined_call_operand.hbm [shape: f32[32,128], index: 3, kind: input, shape index: {}]
  %s4 = inlined_call_operand.hbm [shape: f32[32,128], index: 4, kind: output, shape index: {}]
  %s5 = sld [smem:[#allocation0]]
  $region65: #{tpu_custom_call.1} parent=0
    _
  %s7 = ssub.s32 1, %s5
  %s8 = scalar_select 0, %s7, %s5
  $region1: #{tpu_custom_call.1} parent=0
    #allocation3 [shape = 'u8[16384]{0}', space=vmem, size = 0x4000, scoped, tag = 'input window, operand 1, single buffered']
    #allocation4 [shape = 's32[2]{0}', space=sflag, size = 0x8, scoped, tag = 'scoped memory for tpu_custom_call.1']
    #allocation5 [shape = 's32[2]{0}', space=sflag, size = 0x8, scoped, tag = 'scoped memory for tpu_custom_call.1']
    #allocation6 [shape = 'u8[8192]{0}', space=vmem, size = 0x2000, scoped, tag = 'input window, operand 2']
    #allocation7 [shape = 's32[2]{0}', space=sflag, size = 0x8, scoped, tag = 'scoped memory for tpu_custom_call.1']
    #allocation8 [shape = 'u8[8192]{0}', space=vmem, size = 0x2000, scoped, tag = 'input window, operand 3']
    #allocation9 [shape = 'u8[16384]{0}', space=vmem, size = 0x4000, scoped, tag = 'output window, operand 0, single buffered']
    %9 = vsyncpa [#allocation4], 0
    %10 = vsyncpa [#allocation7], 0
    %s11 = scalar_lea.sflag [#allocation7], 1
    %12 = vsyncpa %s11, 0
    %13 = vsyncpa [#allocation5], 0
    loop: start=0, step=1, limit=5
    $region2: #{tpu_custom_call.1} parent=1 // loop_pre_header
      _
    $region3: #{tpu_custom_call.1} parent=1 // loop_header
      %s15 = sphi 0, %s19
      %p16 = scmp.ge.s32.totalorder %s15, 5
      %s22 = sphi 0, %s34
      %s23 = sphi 0, %s30
      %s24 = sphi 0, %s22
      %s25 = sphi 0, %s23
      %s26 = sphi 0, %s24
      %s27 = sphi 0, %s25
      %s37 = sphi 0, %s39
      %s40 = sphi 0, %s37
      %s41 = sphi 0, %s40
      %s57 = sphi 0, %s41
      %s63 = sphi 0, %s65
      %s66 = sphi 0, %s63
      %s67 = sphi 0, %s66
      %s83 = sphi 0, %s67
      %s93 = sphi 0, %s95
      %s96 = sphi 0, %s93
      %s97 = sphi 0, %s96
      %s113 = sphi 0, %s97
      %s119 = sphi 0, %s121
      %s122 = sphi 0, %s119
      %s123 = sphi 0, %s122
      %s139 = sphi 0, %s123
    $region4: #{tpu_custom_call.1} parent=1 // loop_header_branch
      %18 = sbr.rel (%p16) target = $region8
    $region5: #{tpu_custom_call.1} parent=1 // loop_body
      %s20 = ssub.s32 %s15, 1
      %s21 = ssub.s32 %s15, 2
      %s28 = sadd.s32 1, %s23
      %p29 = scmp.ge.s32.totalorder %s28, 3
      %s30 = scalar_select %p29, 0, %s28
      %s31 = sadd.s32 1, %s22
      %s32 = scalar_select %p29, %s31, %s22
      %p33 = scmp.ge.s32.totalorder %s32, 1
      %s34 = scalar_select %p33, 0, %s32
      %s35 = ssub.s32 %s22, %s34
      %p36 = scmp.eq.s32.totalorder %s35, 0
      %s38 = sadd.s32 %s37, 1
      %s39 = scalar_select %p36, %s37, %s38
      %p42 = pneg %p36
      %p43 = scmp.eq.s32.totalorder %s15, 2
      %p44 = por %p42, %p43
      %p45 = scmp.ne.s32.totalorder %s37, %s40
      %p46 = scmp.eq.s32.totalorder %s15, 0
      %p47 = por %p45, %p46
      %p48 = scmp.ne.s32.totalorder %s37, %s40
      %p49 = scmp.eq.s32.totalorder %s20, 2
      %p50 = por %p48, %p49
      %p51 = scmp.ne.s32.totalorder %s40, %s41
      %p52 = scmp.eq.s32.totalorder %s20, 0
      %p53 = por %p51, %p52
      %p54 = scmp.ne.s32.totalorder %s40, %s41
      %p55 = scmp.eq.s32.totalorder %s21, 2
      %p56 = por %p54, %p55
      %p58 = scmp.ne.s32.totalorder %s41, %s57
      %p59 = scmp.eq.s32.totalorder %s21, 0
      %p60 = por %p58, %p59
      %s61 = ssub.s32 %s23, %s30
      %p62 = scmp.eq.s32.totalorder %s61, 0
      %s64 = sadd.s32 %s63, 1
      %s65 = scalar_select %p62, %s63, %s64
      %p68 = pneg %p62
      %p69 = scmp.eq.s32.totalorder %s15, 2
      %p70 = por %p68, %p69
      %p71 = scmp.ne.s32.totalorder %s63, %s66
      %p72 = scmp.eq.s32.totalorder %s15, 0
      %p73 = por %p71, %p72
      %p74 = scmp.ne.s32.totalorder %s63, %s66
      %p75 = scmp.eq.s32.totalorder %s20, 2
      %p76 = por %p74, %p75
      %p77 = scmp.ne.s32.totalorder %s66, %s67
      %p78 = scmp.eq.s32.totalorder %s20, 0
      %p79 = por %p77, %p78
      %p80 = scmp.ne.s32.totalorder %s66, %s67
      %p81 = scmp.eq.s32.totalorder %s21, 2
      %p82 = por %p80, %p81
      %p84 = scmp.ne.s32.totalorder %s67, %s83
      %p85 = scmp.eq.s32.totalorder %s21, 0
      %p86 = por %p84, %p85
      %s87 = sadd.s32 %s23, 1
      %s88 = sadd.s32 %s30, 1
      %s89 = ssub.s32 %s87, %s88
      %s90 = ssub.s32 %s22, %s34
      %s91 = sor.u32 %s89, %s90
      %p92 = scmp.eq.s32.totalorder %s91, 0
      %s94 = sadd.s32 %s93, 1
      %s95 = scalar_select %p92, %s93, %s94
      %p98 = pneg %p92
      %p99 = scmp.eq.s32.totalorder %s15, 2
      %p100 = por %p98, %p99
      %p101 = scmp.ne.s32.totalorder %s93, %s96
      %p102 = scmp.eq.s32.totalorder %s15, 0
      %p103 = por %p101, %p102
      %p104 = scmp.ne.s32.totalorder %s93, %s96
      %p105 = scmp.eq.s32.totalorder %s20, 2
      %p106 = por %p104, %p105
      %p107 = scmp.ne.s32.totalorder %s96, %s97
      %p108 = scmp.eq.s32.totalorder %s20, 0
      %p109 = por %p107, %p108
      %p110 = scmp.ne.s32.totalorder %s96, %s97
      %p111 = scmp.eq.s32.totalorder %s21, 2
      %p112 = por %p110, %p111
      %p114 = scmp.ne.s32.totalorder %s97, %s113
      %p115 = scmp.eq.s32.totalorder %s21, 0
      %p116 = por %p114, %p115
      %s117 = ssub.s32 %s22, %s34
      %p118 = scmp.eq.s32.totalorder %s117, 0
      %s120 = sadd.s32 %s119, 1
      %s121 = scalar_select %p118, %s119, %s120
      %p124 = pneg %p118
      %p125 = scmp.eq.s32.totalorder %s15, 2
      %p126 = por %p124, %p125
      %p127 = scmp.ne.s32.totalorder %s119, %s122
      %p128 = scmp.eq.s32.totalorder %s15, 0
      %p129 = por %p127, %p128
      %p130 = scmp.ne.s32.totalorder %s119, %s122
      %p131 = scmp.eq.s32.totalorder %s20, 2
      %p132 = por %p130, %p131
      %p133 = scmp.ne.s32.totalorder %s122, %s123
      %p134 = scmp.eq.s32.totalorder %s20, 0
      %p135 = por %p133, %p134
      %p136 = scmp.ne.s32.totalorder %s122, %s123
      %p137 = scmp.eq.s32.totalorder %s21, 2
      %p138 = por %p136, %p137
      %p140 = scmp.ne.s32.totalorder %s123, %s139
      %p141 = scmp.eq.s32.totalorder %s21, 0
      %p142 = por %p140, %p141
      %p143 = scmp.le.s32.totalorder 1, %s15
      %p144 = scmp.lt.s32.totalorder %s15, 4
      %p145 = pnand %p143, %p144
      %p146 = pneg %p145
      // Predicated region
      $region9: #{tpu_custom_call.1} parent=5 // pred_check
        _
      $region10: #{tpu_custom_call.1} parent=5 // pred_check_branch
        %148 = sbr.rel (%p145) target = $region12
      $region11: #{tpu_custom_call.1} parent=5 // pred_region
        %s149 = ssub.s32 %s15, 1
        // Predicated region
        $region13: #{tpu_custom_call.1} parent=11 // pred_check
          %p150 = pneg %p53
        $region14: #{tpu_custom_call.1} parent=11 // pred_check_branch
          %152 = sbr.rel (%p150) target = $region16
        $region15: #{tpu_custom_call.1} parent=11 // pred_region
          %s154 = ssub.s32 512, 512
          %155 = vsyncadd [#allocation4], %s154
          %s156 = smul.addr %s24, 128
          %s157 = scalar_lea.hbm %s1, %s156
          %s158 = sshll.u32 [#allocation3], 4
          %s159 = int_to_ptr.vmem [resolvable:$true] %s158
          %164 = dma.hbm_to_vmem [thread:$0]  %s157, 512, %s159, [#allocation4], 128, 128, 8
        $region16: #{tpu_custom_call.1} parent=11 // pred_fallthru
          _
      $region12: #{tpu_custom_call.1} parent=5 // pred_fallthru
        _
      %p165 = scmp.lt.s32.totalorder %s15, 3
      // Predicated region
      $region17: #{tpu_custom_call.1} parent=5 // pred_check
        %p166 = pneg %p165
      $region18: #{tpu_custom_call.1} parent=5 // pred_check_branch
        %168 = sbr.rel (%p166) target = $region20
      $region19: #{tpu_custom_call.1} parent=5 // pred_region
        // Predicated region
        $region21: #{tpu_custom_call.1} parent=19 // pred_check
          %p169 = pneg %p73
        $region22: #{tpu_custom_call.1} parent=19 // pred_check_branch
          %171 = sbr.rel (%p169) target = $region24
        $region23: #{tpu_custom_call.1} parent=19 // pred_region
          %s172 = sand.u32 %s15, 1
          %s173 = scalar_lea.sflag [#allocation7], %s172
          %s174 = sand.u32 %s63, 1
          %s175 = smul.addr %s174, 8
          %s176 = scalar_lea.vmem [#allocation6], %s175
          %s178 = ssub.s32 128, 128
          %179 = vsyncadd %s173, %s178
          %s180 = smul.addr %s23, 2
          %s181 = smul.addr %s180, 64
          %s182 = scalar_lea.hbm %s2, %s181
          %s183 = sshll.u32 %s176, 4
          %s184 = int_to_ptr.vmem [resolvable:$true] %s183
          %189 = dma.hbm_to_vmem [thread:$0]  %s182, 128, %s184, %s173, 64, 64, 4
        $region24: #{tpu_custom_call.1} parent=19 // pred_fallthru
          _
        // Predicated region
        $region25: #{tpu_custom_call.1} parent=19 // pred_check
          %p190 = pneg %p103
        $region26: #{tpu_custom_call.1} parent=19 // pred_check_branch
          %192 = sbr.rel (%p190) target = $region28
        $region27: #{tpu_custom_call.1} parent=19 // pred_region
          %s193 = sand.u32 %s15, 1
          %s194 = scalar_lea.sflag [#allocation7], %s193
          %s195 = sand.u32 %s93, 1
          %s196 = smul.addr %s195, 8
          %s197 = scalar_lea.vmem [#allocation8], %s196
          %s198 = sadd.s32 %s23, 1
          %s200 = ssub.s32 128, 128
          %201 = vsyncadd %s194, %s200
          %s202 = sadd.s32 %s22, %s198
          %s203 = smul.addr %s202, 128
          %s204 = scalar_lea.hbm %s3, %s203
          %s206 = sshll.u32 %s197, 4
          %s207 = int_to_ptr.vmem [resolvable:$true] %s206
          %209 = dma.hbm_to_vmem [thread:$0]  %s204, 128, %s207, %s194
        $region28: #{tpu_custom_call.1} parent=19 // pred_fallthru
          _
      $region20: #{tpu_custom_call.1} parent=5 // pred_fallthru
        _
      %p210 = scmp.le.s32.totalorder 1, %s15
      %p211 = scmp.lt.s32.totalorder %s15, 4
      %p212 = pnand %p210, %p211
      %p213 = pneg %p212
      // Predicated region
      $region29: #{tpu_custom_call.1} parent=5 // pred_check
        _
      $region30: #{tpu_custom_call.1} parent=5 // pred_check_branch
        %215 = sbr.rel (%p212) target = $region32
      $region31: #{tpu_custom_call.1} parent=5 // pred_region
        %s216 = ssub.s32 %s15, 1
        // Predicated region
        $region33: #{tpu_custom_call.1} parent=31 // pred_check
          %p217 = pneg %p53
        $region34: #{tpu_custom_call.1} parent=31 // pred_check_branch
          %219 = sbr.rel (%p217) target = $region36
        $region35: #{tpu_custom_call.1} parent=31 // pred_region
          %220 = dma.done [#allocation4], 512
        $region36: #{tpu_custom_call.1} parent=31 // pred_fallthru
          _
        %s221 = sand.u32 %s20, 1
        %s222 = scalar_lea.sflag [#allocation7], %s221
        %s223 = sand.u32 %s66, 1
        %s224 = smul.addr %s223, 8
        %s225 = scalar_lea.vmem [#allocation6], %s224
        // Predicated region
        $region37: #{tpu_custom_call.1} parent=31 // pred_check
          %p226 = pneg %p79
        $region38: #{tpu_custom_call.1} parent=31 // pred_check_branch
          %228 = sbr.rel (%p226) target = $region40
        $region39: #{tpu_custom_call.1} parent=31 // pred_region
          %229 = dma.done %s222, 128
        $region40: #{tpu_custom_call.1} parent=31 // pred_fallthru
          _
        %s230 = sand.u32 %s20, 1
        %s231 = scalar_lea.sflag [#allocation7], %s230
        %s232 = sand.u32 %s96, 1
        %s233 = smul.addr %s232, 8
        %s234 = scalar_lea.vmem [#allocation8], %s233
        // Predicated region
        $region41: #{tpu_custom_call.1} parent=31 // pred_check
          %p235 = pneg %p109
        $region42: #{tpu_custom_call.1} parent=31 // pred_check_branch
          %237 = sbr.rel (%p235) target = $region44
        $region43: #{tpu_custom_call.1} parent=31 // pred_region
          %238 = dma.done %s231, 128
        $region44: #{tpu_custom_call.1} parent=31 // pred_fallthru
          _
        %p239 = pneg %p53
        %p240 = pneg %p50
        %s241 = sand.u32 %s20, 1
        %s242 = scalar_lea.sflag [#allocation7], %s241
        %s243 = sand.u32 %s66, 1
        %s244 = smul.addr %s243, 8
        %s245 = scalar_lea.vmem [#allocation6], %s244
        %p246 = pneg %p79
        %p247 = pneg %p76
        %s248 = sand.u32 %s20, 1
        %s249 = scalar_lea.sflag [#allocation7], %s248
        %s250 = sand.u32 %s96, 1
        %s251 = smul.addr %s250, 8
        %s252 = scalar_lea.vmem [#allocation8], %s251
        %p253 = pneg %p109
        %p254 = pneg %p106
        %p255 = pneg %p135
        %p256 = pneg %p132
        %s257 = sadd.s32 %s25, 1
        %p258 = scmp.eq.s32.totalorder %s25, 0
        // Predicated region
        $region45: #{tpu_custom_call.1} parent=31 // pred_check
          %p259 = pneg %p258
        $region46: #{tpu_custom_call.1} parent=31 // pred_check_branch
          %261 = sbr.rel (%p259) target = $region48
        $region47: #{tpu_custom_call.1} parent=31 // pred_region
          %s262 = smul.u32 %s24, 32
          %s263 = smul.addr %s262, 16
          %s264 = scalar_lea.hbm %s0, %s263
          // Predicated region
          $region49: #{tpu_custom_call.1} parent=47 // pred_check
            _
          $region50: #{tpu_custom_call.1} parent=47 // pred_check_branch
            %266 = sbr.rel target = $region52
          $region51: #{tpu_custom_call.1} parent=47 // pred_region
            %267 = sst [smem:[#allocation12]] [#allocation11]
            %268 = sst [smem:[#allocation13]] [#allocation10]
          $region52: #{tpu_custom_call.1} parent=47 // pred_fallthru
            _
          %270 = shalt.err (0)
          %s272 = sshll.u32 [#allocation9], 4
          %s273 = int_to_ptr.vmem [resolvable:$true] %s272
          %275 = dma.hbm_to_vmem [thread:$0]  %s264, 512, %s273, [#allocation2]
          %s276 = smul.u32 32, 1
          %s277 = sshll.u32 %s276, 4
          %278 = dma.done [#allocation2], %s277
        $region48: #{tpu_custom_call.1} parent=31 // pred_fallthru
          _
        %v279 = vld [vmem:[#allocation9] sm:$0xff]
        %v280 = vld [vmem:[#allocation9 + $0x8] sm:$0xff]
        %v281 = vld [vmem:[#allocation9 + $0x10] sm:$0xff]
        %v282 = vld [vmem:[#allocation9 + $0x18] sm:$0xff]
        %v283 = vld [vmem:[#allocation3] sm:$0xff]
        %v284 = vld [vmem:[#allocation3 + $0x8] sm:$0xff]
        %v285 = vld [vmem:[#allocation3 + $0x10] sm:$0xff]
        %v286 = vld [vmem:[#allocation3 + $0x18] sm:$0xff]
        %v287 = vadd.f32 %v279, %v283
        %v288 = vadd.f32 %v280, %v284
        %v289 = vadd.f32 %v281, %v285
        %v290 = vadd.f32 %v282, %v286
        %v291 = vld [vmem:[%s225] sm:$0xf]
        %v292 = vld [vmem:[%s225 + $0x4] sm:$0xf]
        %v293 = vunpack.c.l.bf16 %v291
        %v294 = vunpack.c.l.bf16 %v292
        %vm295 = vcmask 261120
        %v297 = vsel %vm295, %v293, 0
        %v300 = vsel %vm295, %v294, 0
        %302 = vmatprep.subr.mxu0 0.0
        %303 = vmatpush1.msra.mxu0 0.0
        %304 = vmatprep.subr.mxu0 0.0
        %305 = vmatpush1.msra.mxu0 0.0
        %306 = vmatprep.subr.mxu0 0.0
        %307 = vmatpush1.msra.mxu0 0.0
        %308 = vmatprep.subr.mxu0 0.0
        %309 = vmatpush1.msra.mxu0 0.0
        %310 = vmatprep.subr.mxu0 0.0
        %311 = vmatpush1.msra.mxu0 0.0
        %312 = vmatprep.subr.mxu0 0.0
        %313 = vmatpush1.msra.mxu0 0.0
        %314 = vmatprep.subr.mxu0 0.0
        %315 = vmatpush1.msra.mxu0 0.0
        %316 = vmatprep.subr.mxu0 0.0
        %317 = vmatpush1.msra.mxu0 0.0
        %318 = vmatprep.subr.mxu0 0.0
        %319 = vmatpush1.msra.mxu0 0.0
        %320 = vmatprep.subr.mxu0 0.0
        %321 = vmatpush1.msra.mxu0 0.0
        %322 = vmatprep.subr.mxu0 0.0
        %323 = vmatpush1.msra.mxu0 0.0
        %324 = vmatprep.subr.mxu0 0.0
        %325 = vmatpush1.msra.mxu0 0.0
        %326 = vmatprep.subr.mxu0 0.0
        %327 = vmatpush1.msra.mxu0 %v290
        %328 = vmatprep.subr.mxu0 0.0
        %329 = vmatpush1.msra.mxu0 %v289
        %330 = vmatprep.subr.mxu0 0.0
        %331 = vmatpush1.msra.mxu0 %v288
        %332 = vmatprep.subr.mxu0 0.0
        %333 = vmatpush1.msra.mxu0 %v287
        %334 = vmatprep.subr.mxu0 0.0
        %335 = vmatpush2.msra.mxu0 0.0
        %336 = vmatprep.subr.mxu0 0.0
        %337 = vmatpush2.msra.mxu0 0.0
        %338 = vmatprep.subr.mxu0 0.0
        %339 = vmatpush2.msra.mxu0 0.0
        %340 = vmatprep.subr.mxu0 0.0
        %341 = vmatpush2.msra.mxu0 0.0
        %342 = vmatprep.subr.mxu0 0.0
        %343 = vmatpush2.msra.mxu0 0.0
        %344 = vmatprep.subr.mxu0 0.0
        %345 = vmatpush2.msra.mxu0 0.0
        %346 = vmatprep.subr.mxu0 0.0
        %347 = vmatpush2.msra.mxu0 0.0
        %348 = vmatprep.subr.mxu0 0.0
        %349 = vmatpush2.msra.mxu0 0.0
        %350 = vmatprep.subr.mxu0 0.0
        %351 = vmatpush2.msra.mxu0 0.0
        %352 = vmatprep.subr.mxu0 0.0
        %353 = vmatpush2.msra.mxu0 0.0
        %354 = vmatprep.subr.mxu0 0.0
        %355 = vmatpush2.msra.mxu0 0.0
        %356 = vmatprep.subr.mxu0 0.0
        %357 = vmatpush2.msra.mxu0 0.0
        %358 = vmatprep.subr.mxu0 0.0
        %359 = vmatpush2.msra.mxu0 0.0
        %360 = vmatprep.subr.mxu0 0.0
        %361 = vmatpush2.msra.mxu0 0.0
        %362 = vmatprep.subr.mxu0 0.0
        %363 = vmatpush2.msra.mxu0 0.0
        %364 = vmatprep.subr.mxu0 0.0
        %365 = vmatpush2.msra.mxu0 0.0
        %366 = vmatprep.mubr.f32.mxu0 0.0
        %367 = vmatmul.mubr.f32.gmra.mxu0 %v297
        %v368 = vpop.f32.mrf.mxu0
        %v369 = vadd.f32 0.0, %v368
        %v370 = vpop.f32.mrf.mxu0
        %371 = vmatprep.mubr.f32.mxu0 0.0
        %372 = vmatmul.mubr.f32.gmra.mxu0 %v300
        %v373 = vpop.f32.mrf.mxu0
        %v374 = vadd.f32 0.0, %v373
        %v375 = vpop.f32.mrf.mxu0
        %376 = vdwg.mxu0
        %v377 = vmax.f32 %v369, %v374
        %v378 = vld [vmem:[%s234] sm:$0xff]
        %v379 = vadd.f32 %v377, %v378
        %s380 = smul.u32 %s25, 8
        %s381 = sadd.s32 %s380, 8
        %s382 = scalar_lea.vmem [#allocation9], %s381
        %383 = vst [vmem:[%s382] sm:$0xff] %v379
        // Predicated region
        $region53: #{tpu_custom_call.1} parent=31 // pred_check
          %p384 = pneg %p132
        $region54: #{tpu_custom_call.1} parent=31 // pred_check_branch
          %386 = sbr.rel (%p384) target = $region56
        $region55: #{tpu_custom_call.1} parent=31 // pred_region
          %s388 = ssub.s32 512, 512
          %389 = vsyncadd [#allocation5], %s388
          %s390 = smul.addr %s24, 128
          %s391 = scalar_lea.hbm %s4, %s390
          %s392 = sshll.u32 [#allocation9], 4
          %s393 = int_to_ptr.vmem [resolvable:$true] %s392
          %398 = dma.vmem_to_hbm [thread:$0]  %s393, 512, %s391, [#allocation5], 128, 128, 8
        $region56: #{tpu_custom_call.1} parent=31 // pred_fallthru
          _
        // Predicated region
        $region57: #{tpu_custom_call.1} parent=31 // pred_check
          %p399 = pneg %p132
        $region58: #{tpu_custom_call.1} parent=31 // pred_check_branch
          %401 = sbr.rel (%p399) target = $region60
        $region59: #{tpu_custom_call.1} parent=31 // pred_region
          %402 = dma.done [#allocation5], 512
        $region60: #{tpu_custom_call.1} parent=31 // pred_fallthru
          _
      $region32: #{tpu_custom_call.1} parent=5 // pred_fallthru
        _
      %p403 = scmp.le.s32.totalorder 2, %s15
      // Predicated region
      $region61: #{tpu_custom_call.1} parent=5 // pred_check
        %p404 = pneg %p403
      $region62: #{tpu_custom_call.1} parent=5 // pred_check_branch
        %406 = sbr.rel (%p404) target = $region64
      $region63: #{tpu_custom_call.1} parent=5 // pred_region
        %s407 = ssub.s32 %s15, 2
      $region64: #{tpu_custom_call.1} parent=5 // pred_fallthru
        _
    $region6: #{tpu_custom_call.1} parent=1 // loop_footer
      %s19 = sadd.s32 1, %s15
    $region7: #{tpu_custom_call.1} parent=1 // loop_footer_branch
      %14 = sbr.rel target = $region3
    $region8: #{tpu_custom_call.1} parent=1 // loop_exit
      _
    %408 = vsyncpa [#allocation4], 1
    %s409 = scalar_lea.sflag [#allocation4], 1
    %410 = vsyncpa %s409, 1
    %411 = vsyncpa [#allocation7], 1
    %s412 = scalar_lea.sflag [#allocation7], 1
    %413 = vsyncpa %s412, 1
    %414 = vsyncpa [#allocation5], 1
    %s415 = scalar_lea.sflag [#allocation5], 1
    %416 = vsyncpa %s415, 1
  %417 = vsyncmov [#allocation2]
  %s418 = vpop.sfrf %417
  %p419 = scmp.eq.s32.totalorder %s418, 0
  %p420 = pneg %p419
  %422 = shalt.err (%p420)

</llo_original>
